<compile_context>
chip_gen: v6e
topology: v6e:2x2x1
jax: 0.10.0
libtpu: 0.0.40
codegen_flags: <defaults>
</compile_context>

<pallas_src>
import jax
import jax.numpy as jnp
from jax.experimental import pallas as pl
from jax.experimental.pallas import tpu as pltpu


def _round_up(a, b):
    return (a + b - 1) // b * b


def _make_affinity_kernel(use_tmat, ks_per_chunk):
    """Builds the kernel body.

    Grid = (row blocks ["parallel"], CD chunks ["arbitrary", last]).
    The output block index is constant along the chunk axis, so out_ref is the
    VMEM-resident f32 accumulator (zeroed at chunk 0, written back by Pallas
    when the row block changes).
    """

    def _accumulate(x_ref, w_ref, sel_ref, out_ref, yt):
        @pl.when(pl.program_id(1) == 0)
        def _():
            out_ref[...] = jnp.zeros_like(out_ref)

        v = jnp.dot(x_ref[...], w_ref[...],
                    preferred_element_type=jnp.float32)        # (R_T, CDc)
        out_ref[...] += jnp.dot(v * yt, sel_ref[...],
                                preferred_element_type=jnp.float32)  # (R_T, K_OUT)

    if use_tmat:
        def kernel(x_ref, y_ref, w_ref, t_ref, sel_ref, out_ref):
            # d % 128 != 0: replicate y across the k blocks with a 0/1 matmul.
            yt = jnp.dot(y_ref[...], t_ref[...],
                         preferred_element_type=jnp.float32)
            _accumulate(x_ref, w_ref, sel_ref, out_ref, yt)
    else:
        def kernel(x_ref, y_ref, w_ref, sel_ref, out_ref):
            # d % 128 == 0: replication is whole-vreg lane-block copies —
            # no Tmat operand, no extra MXU flops, no XLU work.
            yt = jnp.tile(y_ref[...], (1, ks_per_chunk)).astype(jnp.float32)
            _accumulate(x_ref, w_ref, sel_ref, out_ref, yt)

    return kernel


def affinity_forward(X, Y, W, bias, *, row_tile=1024, cd_chunk=2048,
                     compute_dtype=jnp.bfloat16):
    """X, Y: (B, N, d); W: (K, d, d); bias: (K,)  ->  (B, N, K) scores (f32)."""
    assert X.shape == Y.shape
    B, N, d = X.shape
    K = W.shape[0]
    assert W.shape == (K, d, d) and bias.shape == (K,)

    f32 = jnp.float32
    cdt = compute_dtype
    K_OUT = _round_up(K, 8)                 # 15 -> 16 output lanes (was 128)

    # ---- Row tiling: no full HBM padding copy; pad at most 7 rows to reach a
    # sublane multiple of 8, ragged last block (if any) is clipped by Pallas.
    R = B * N
    R8 = _round_up(R, 8)
    R_T = min(_round_up(row_tile, 8), R8)   # always a multiple of 8
    if R8 > 8:                              # >= 2 row blocks for v7x's 2 TCs
        R_T = min(R_T, _round_up(pl.cdiv(R8, 2), 8))
    grid_rows = pl.cdiv(R8, R_T)

    # ---- Contraction chunking over CD = K*d (bounds VMEM at large d). ----
    CD = K * d
    use_tmat = (d % 128 != 0)
    if use_tmat:
        CDc = min(_round_up(CD, 128), _round_up(cd_chunk, 128))
        num_chunks = pl.cdiv(CD, CDc)
        ks_per_chunk = None
    else:
        ks_per_chunk = max(1, min(K, cd_chunk // d))
        CDc = ks_per_chunk * d
        num_chunks = pl.cdiv(K, ks_per_chunk)
    CDp = num_chunks * CDc                  # zero-padded fused width

    # ---- Operand layout, hoisted out of the kernel. Inputs/weights in bf16
    # (half the DMA bytes, native MXU rate); all dots accumulate in f32. ----
    Xf = X.reshape(R, d).astype(cdt)
    Yf = Y.reshape(R, d).astype(cdt)
    if R8 != R:
        Xf = jnp.pad(Xf, ((0, R8 - R), (0, 0)))
        Yf = jnp.pad(Yf, ((0, R8 - R), (0, 0)))

    # Wmat[i, k*d + j] = W[k, i, j]
    Wmat = jnp.transpose(W.astype(f32), (1, 0, 2)).reshape(d, CD)
    Wmat = jnp.pad(Wmat, ((0, 0), (0, CDp - CD))).astype(cdt)
    # Sel[k*d + j, k] = 1  ->  (g @ Sel)[r, k] = sum_j g[r, k*d + j]
    # Kept in f32 (tiny, second-stage operand; keeps products unrounded).
    rows = jnp.arange(CD)
    Sel = jnp.zeros((CDp, K_OUT), f32).at[rows, rows // d].set(1.0)

    # Single chunk -> weight block indices never change -> single-buffer them.
    resident = (num_chunks == 1)

    def _weight_spec(shape, index_map):
        if resident:
            return pl.BlockSpec(shape, index_map, pipeline_mode=pl.Buffered(1))
        return pl.BlockSpec(shape, index_map)

    in_specs = [
        pl.BlockSpec((R_T, d), lambda i, c: (i, 0)),       # X rows (pipelined)
        pl.BlockSpec((R_T, d), lambda i, c: (i, 0)),       # Y rows (pipelined)
        _weight_spec((d, CDc), lambda i, c: (0, c)),       # Wmat chunk
    ]
    operands = [Xf, Yf, Wmat]
    if use_tmat:
        # T[j, k*d + j] = 1  ->  (y @ T)[r, k*d + j] = y[r, j]
        Tmat = jnp.tile(jnp.eye(d, dtype=f32), (1, K))
        Tmat = jnp.pad(Tmat, ((0, 0), (0, CDp - CD))).astype(cdt)
        in_specs.append(_weight_spec((d, CDc), lambda i, c: (0, c)))
        operands.append(Tmat)
    in_specs.append(_weight_spec((CDc, K_OUT), lambda i, c: (c, 0)))
    operands.append(Sel)

    out = pl.pallas_call(
        _make_affinity_kernel(use_tmat, ks_per_chunk),
        out_shape=jax.ShapeDtypeStruct((R8, K_OUT), f32),
        grid=(grid_rows, num_chunks),
        in_specs=in_specs,
        out_specs=pl.BlockSpec((R_T, K_OUT), lambda i, c: (i, 0)),
        compiler_params=pltpu.CompilerParams(
            dimension_semantics=("parallel", "arbitrary"),
            vmem_limit_bytes=64 * 1024 * 1024),
    )(*operands)

    # Strip row/lane padding; bias add stays out of the hot loop.
    return out[:R, :K].reshape(B, N, K) + bias.astype(f32)


def _affinity_ref(X, Y, W, bias):
    # Pure-JAX reference: identical math to torch.nn.Bilinear.
    return jnp.einsum("bni,kij,bnj->bnk", X, W, Y) + bias


def _check(X, Y, W, bias, M, *, atol_f32):
    f32, bf16 = jnp.float32, jnp.bfloat16
    # Apples-to-apples: reference on the same bf16-quantized operands the
    # kernel consumes (both accumulate in f32) -> only summation-order noise.
    Xq, Yq, Wq = (a.astype(bf16).astype(f32) for a in (X, Y, W))
    M_q = _affinity_ref(Xq, Yq, Wq, bias)
    assert jnp.allclose(M, M_q, atol=3e-3, rtol=3e-3), \
        float(jnp.max(jnp.abs(M - M_q)))
    # Sanity bound vs the full-f32 reference (bf16 input quantization only).
    M_f = _affinity_ref(X, Y, W, bias)
    assert float(jnp.max(jnp.abs(M - M_f))) < atol_f32


if __name__ == "__main__":
    key = jax.random.PRNGKey(0)

    # ---- Main run: shapes consistent with the module (B=2 graphs, N=8 nodes,
    # d=32 features, K=15 bilinear outputs as in nn.Bilinear(d, d, 15)). ----
    B, N, d, K = 2, 8, 32, 15
    kx, ky, kw, kb, k2 = jax.random.split(key, 5)
    X = jax.random.normal(kx, (B, N, d), dtype=jnp.float32)
    Y = jax.random.normal(ky, (B, N, d), dtype=jnp.float32)
    bound = 1.0 / (d ** 0.5)                    # nn.Bilinear default init
    W = jax.random.uniform(kw, (K, d, d), minval=-bound, maxval=bound,
                           dtype=jnp.float32)
    bias = jax.random.uniform(kb, (K,), minval=-bound, maxval=bound,
                              dtype=jnp.float32)

    M = jax.block_until_ready(affinity_forward(X, Y, W, bias))
    assert M.shape == (B, N, K)
    _check(X, Y, W, bias, M, atol_f32=0.35)

    # ---- Secondary run: exercises the d % 128 == 0 (no-Tmat, in-kernel tile)
    # path, multi-chunk CD accumulation and an odd (padded-to-8) row count. ----
    B2, N2, d2 = 1, 9, 128
    kx2, ky2, kw2, kb2 = jax.random.split(k2, 4)
    X2 = jax.random.normal(kx2, (B2, N2, d2), dtype=jnp.float32)
    Y2 = jax.random.normal(ky2, (B2, N2, d2), dtype=jnp.float32)
    b2 = 1.0 / (d2 ** 0.5)
    W2 = jax.random.uniform(kw2, (K, d2, d2), minval=-b2, maxval=b2,
                            dtype=jnp.float32)
    bias2 = jax.random.uniform(kb2, (K,), minval=-b2, maxval=b2,
                               dtype=jnp.float32)

    M2 = jax.block_until_ready(
        affinity_forward(X2, Y2, W2, bias2, row_tile=8, cd_chunk=512))
    assert M2.shape == (B2, N2, K)
    _check(X2, Y2, W2, bias2, M2, atol_f32=0.8)

    print("KERNEL_OK")
</pallas_src>

<mosaic_0001>
module attributes {stable_mosaic.version = 11 : i64} {
  func.func @kernel(%arg0: i32, %arg1: i32, %arg2: memref<8x32xbf16, #tpu.memory_space<vmem>>, %arg3: memref<8x32xbf16, #tpu.memory_space<vmem>>, %arg4: memref<32x512xbf16, #tpu.memory_space<vmem>>, %arg5: memref<32x512xbf16, #tpu.memory_space<vmem>>, %arg6: memref<512x16xf32, #tpu.memory_space<vmem>>, %arg7: memref<8x16xf32, #tpu.memory_space<vmem>>) attributes {dimension_semantics = [#tpu.dimension_semantics<parallel>, #tpu.dimension_semantics<arbitrary>], iteration_bounds = array<i64: 2, 1>, scalar_prefetch = 0 : i64, scratch_operands = 0 : i64, tpu.core_type = #tpu.core_type<tc>, window_params = [{transform_indices = @transform_0, window_bounds = array<i64: 8, 32>}, {transform_indices = @transform_1, window_bounds = array<i64: 8, 32>}, {pipeline_mode = #tpu.pipeline_mode<synchronous>, transform_indices = @transform_2, window_bounds = array<i64: 32, 512>}, {pipeline_mode = #tpu.pipeline_mode<synchronous>, transform_indices = @transform_3, window_bounds = array<i64: 32, 512>}, {pipeline_mode = #tpu.pipeline_mode<synchronous>, transform_indices = @transform_4, window_bounds = array<i64: 512, 16>}, {transform_indices = @transform_5, window_bounds = array<i64: 8, 16>}]} {
    %c0 = arith.constant 0 : index
    %c0_0 = arith.constant 0 : index
    %0 = vector.load %arg3[%c0, %c0_0] : memref<8x32xbf16, #tpu.memory_space<vmem>>, vector<8x32xbf16>
    %c0_1 = arith.constant 0 : index
    %c0_2 = arith.constant 0 : index
    %1 = vector.load %arg5[%c0_1, %c0_2] : memref<32x512xbf16, #tpu.memory_space<vmem>>, vector<32x512xbf16>
    %cst = arith.constant dense<0.000000e+00> : vector<8x512xf32>
    %2 = tpu.matmul %0, %1, %cst {dimension_numbers = #tpu.dot_dimension_numbers<[1], [0], [0], [1], [0, 0, 1, 1], [], []>} : vector<8x32xbf16>, vector<32x512xbf16>, vector<8x512xf32> -> vector<8x512xf32>
    %c0_i32 = arith.constant 0 : i32
    %3 = arith.cmpi eq, %arg1, %c0_i32 : i32
    %4 = arith.extui %3 : i1 to i32
    %c0_i32_3 = arith.constant 0 : i32
    %5 = arith.cmpi ne, %4, %c0_i32_3 : i32
    scf.if %5 {
      %cst_16 = arith.constant 0.000000e+00 : f32
      %15 = vector.broadcast %cst_16 : f32 to vector<8x16xf32>
      %c0_17 = arith.constant 0 : index
      %c0_18 = arith.constant 0 : index
      %16 = vector.load %arg7[%c0_17, %c0_18] : memref<8x16xf32, #tpu.memory_space<vmem>>, vector<8x16xf32>
      tpu.vector_store %arg7[%c0_17, %c0_18], %15 {strides = array<i32>} : memref<8x16xf32, #tpu.memory_space<vmem>>, vector<8x16xf32>,
    } else {
    }
    %c0_4 = arith.constant 0 : index
    %c0_5 = arith.constant 0 : index
    %6 = vector.load %arg2[%c0_4, %c0_5] : memref<8x32xbf16, #tpu.memory_space<vmem>>, vector<8x32xbf16>
    %c0_6 = arith.constant 0 : index
    %c0_7 = arith.constant 0 : index
    %7 = vector.load %arg4[%c0_6, %c0_7] : memref<32x512xbf16, #tpu.memory_space<vmem>>, vector<32x512xbf16>
    %cst_8 = arith.constant dense<0.000000e+00> : vector<8x512xf32>
    %8 = tpu.matmul %6, %7, %cst_8 {dimension_numbers = #tpu.dot_dimension_numbers<[1], [0], [0], [1], [0, 0, 1, 1], [], []>} : vector<8x32xbf16>, vector<32x512xbf16>, vector<8x512xf32> -> vector<8x512xf32>
    %c0_9 = arith.constant 0 : index
    %c0_10 = arith.constant 0 : index
    %9 = vector.load %arg7[%c0_9, %c0_10] : memref<8x16xf32, #tpu.memory_space<vmem>>, vector<8x16xf32>
    %10 = arith.mulf %8, %2 : vector<8x512xf32>
    %c0_11 = arith.constant 0 : index
    %c0_12 = arith.constant 0 : index
    %11 = vector.load %arg6[%c0_11, %c0_12] : memref<512x16xf32, #tpu.memory_space<vmem>>, vector<512x16xf32>
    %cst_13 = arith.constant dense<0.000000e+00> : vector<8x16xf32>
    %12 = tpu.matmul %10, %11, %cst_13 {dimension_numbers = #tpu.dot_dimension_numbers<[1], [0], [0], [1], [0, 0, 1, 1], [], []>} : vector<8x512xf32>, vector<512x16xf32>, vector<8x16xf32> -> vector<8x16xf32>
    %13 = arith.addf %9, %12 : vector<8x16xf32>
    %c0_14 = arith.constant 0 : index
    %c0_15 = arith.constant 0 : index
    %14 = vector.load %arg7[%c0_14, %c0_15] : memref<8x16xf32, #tpu.memory_space<vmem>>, vector<8x16xf32>
    tpu.vector_store %arg7[%c0_14, %c0_15], %13 {strides = array<i32>} : memref<8x16xf32, #tpu.memory_space<vmem>>, vector<8x16xf32>,
    return
  }
  func.func @transform_0(%arg0: i32, %arg1: i32) -> (i32, i32) {
    %c0_i32 = arith.constant 0 : i32
    %c0_i32_0 = arith.constant 0 : i32
    return %arg0, %c0_i32 : i32, i32
  }
  func.func @transform_1(%arg0: i32, %arg1: i32) -> (i32, i32) {
    %c0_i32 = arith.constant 0 : i32
    %c0_i32_0 = arith.constant 0 : i32
    return %arg0, %c0_i32 : i32, i32
  }
  func.func @transform_2(%arg0: i32, %arg1: i32) -> (i32, i32) {
    %c0_i32 = arith.constant 0 : i32
    %c0_i32_0 = arith.constant 0 : i32
    return %c0_i32, %arg1 : i32, i32
  }
  func.func @transform_3(%arg0: i32, %arg1: i32) -> (i32, i32) {
    %c0_i32 = arith.constant 0 : i32
    %c0_i32_0 = arith.constant 0 : i32
    return %c0_i32, %arg1 : i32, i32
  }
  func.func @transform_4(%arg0: i32, %arg1: i32) -> (i32, i32) {
    %c0_i32 = arith.constant 0 : i32
    %c0_i32_0 = arith.constant 0 : i32
    return %arg1, %c0_i32 : i32, i32
  }
  func.func @transform_5(%arg0: i32, %arg1: i32) -> (i32, i32) {
    %c0_i32 = arith.constant 0 : i32
    %c0_i32_0 = arith.constant 0 : i32
    return %arg0, %c0_i32 : i32, i32
  }
}

</mosaic_0001>

<llo_original>
// kernel: tpu_custom_call.1
$region0: #{tpu_custom_call.1}
  #allocation0 [shape = 'u32[]', space=smem, size = 0x4, offset = 0x4, fixed_abs, tag = 'smem constant byte address 0x4 - core index']
  #allocation1 [shape = 'u32[144,128]{1,0:T(1,128)}', space=vmem, size = 0x12000, scoped, tag = 'internal scratch']
  %s0 = inlined_call_operand.vmem [shape: bf16[16,32], index: 0, kind: input, shape index: {}]
  %s1 = inlined_call_operand.vmem [shape: bf16[16,32], index: 1, kind: input, shape index: {}]
  %s2 = inlined_call_operand.vmem [shape: bf16[32,512], index: 2, kind: input, shape index: {}]
  %s3 = inlined_call_operand.vmem [shape: bf16[32,512], index: 3, kind: input, shape index: {}]
  %s4 = inlined_call_operand.vmem [shape: f32[512,16], index: 4, kind: input, shape index: {}]
  %s5 = inlined_call_operand.hbm [shape: f32[16,16], index: 5, kind: output, shape index: {}]
  %s6 = sld [smem:[#allocation0]]
  $region57: #{tpu_custom_call.1} parent=0
    _
  %s8 = ssub.s32 1, %s6
  %s9 = scalar_select 0, %s8, %s6
  $region1: #{tpu_custom_call.1} parent=0
    #allocation2 [shape = 'u8[8192]{0}', space=vmem, size = 0x2000, scoped, tag = 'output window, operand 0']
    #allocation3 [shape = 's32[2]{0}', space=sflag, size = 0x8, scoped, tag = 'scoped memory for tpu_custom_call.1']
    %10 = vsyncpa [#allocation3], 0
    %s11 = scalar_lea.sflag [#allocation3], 1
    %12 = vsyncpa %s11, 0
    loop: start=0, step=1, limit=4
    $region2: #{tpu_custom_call.1} parent=1 // loop_pre_header
      _
    $region3: #{tpu_custom_call.1} parent=1 // loop_header
      %s14 = sphi 0, %s18
      %p15 = scmp.ge.s32.totalorder %s14, 4
      %s21 = sphi 0, %s33
      %s22 = sphi 0, %s29
      %s23 = sphi 0, %s21
      %s24 = sphi 0, %s22
      %s25 = sphi 0, %s23
      %s26 = sphi 0, %s24
      %s36 = sphi 0, %s38
      %s39 = sphi 0, %s36
      %s40 = sphi 0, %s39
      %s56 = sphi 0, %s40
      %s62 = sphi 0, %s64
      %s65 = sphi 0, %s62
      %s66 = sphi 0, %s65
      %s82 = sphi 0, %s66
      %s88 = sphi 0, %s90
      %s91 = sphi 0, %s88
      %s92 = sphi 0, %s91
      %s108 = sphi 0, %s92
      %s114 = sphi 0, %s116
      %s117 = sphi 0, %s114
      %s118 = sphi 0, %s117
      %s134 = sphi 0, %s118
      %s140 = sphi 0, %s142
      %s143 = sphi 0, %s140
      %s144 = sphi 0, %s143
      %s160 = sphi 0, %s144
      %s166 = sphi 0, %s168
      %s169 = sphi 0, %s166
      %s170 = sphi 0, %s169
      %s186 = sphi 0, %s170
    $region4: #{tpu_custom_call.1} parent=1 // loop_header_branch
      %17 = sbr.rel (%p15) target = $region8
    $region5: #{tpu_custom_call.1} parent=1 // loop_body
      %s19 = ssub.s32 %s14, 1
      %s20 = ssub.s32 %s14, 2
      %s27 = sadd.s32 1, %s22
      %p28 = scmp.ge.s32.totalorder %s27, 1
      %s29 = scalar_select %p28, 0, %s27
      %s30 = sadd.s32 1, %s21
      %s31 = scalar_select %p28, %s30, %s21
      %p32 = scmp.ge.s32.totalorder %s31, 2
      %s33 = scalar_select %p32, 0, %s31
      %s34 = ssub.s32 %s21, %s33
      %p35 = scmp.eq.s32.totalorder %s34, 0
      %s37 = sadd.s32 %s36, 1
      %s38 = scalar_select %p35, %s36, %s37
      %p41 = pneg %p35
      %p42 = scmp.eq.s32.totalorder %s14, 1
      %p43 = por %p41, %p42
      %p44 = scmp.ne.s32.totalorder %s36, %s39
      %p45 = scmp.eq.s32.totalorder %s14, 0
      %p46 = por %p44, %p45
      %p47 = scmp.ne.s32.totalorder %s36, %s39
      %p48 = scmp.eq.s32.totalorder %s19, 1
      %p49 = por %p47, %p48
      %p50 = scmp.ne.s32.totalorder %s39, %s40
      %p51 = scmp.eq.s32.totalorder %s19, 0
      %p52 = por %p50, %p51
      %p53 = scmp.ne.s32.totalorder %s39, %s40
      %p54 = scmp.eq.s32.totalorder %s20, 1
      %p55 = por %p53, %p54
      %p57 = scmp.ne.s32.totalorder %s40, %s56
      %p58 = scmp.eq.s32.totalorder %s20, 0
      %p59 = por %p57, %p58
      %s60 = ssub.s32 %s21, %s33
      %p61 = scmp.eq.s32.totalorder %s60, 0
      %s63 = sadd.s32 %s62, 1
      %s64 = scalar_select %p61, %s62, %s63
      %p67 = pneg %p61
      %p68 = scmp.eq.s32.totalorder %s14, 1
      %p69 = por %p67, %p68
      %p70 = scmp.ne.s32.totalorder %s62, %s65
      %p71 = scmp.eq.s32.totalorder %s14, 0
      %p72 = por %p70, %p71
      %p73 = scmp.ne.s32.totalorder %s62, %s65
      %p74 = scmp.eq.s32.totalorder %s19, 1
      %p75 = por %p73, %p74
      %p76 = scmp.ne.s32.totalorder %s65, %s66
      %p77 = scmp.eq.s32.totalorder %s19, 0
      %p78 = por %p76, %p77
      %p79 = scmp.ne.s32.totalorder %s65, %s66
      %p80 = scmp.eq.s32.totalorder %s20, 1
      %p81 = por %p79, %p80
      %p83 = scmp.ne.s32.totalorder %s66, %s82
      %p84 = scmp.eq.s32.totalorder %s20, 0
      %p85 = por %p83, %p84
      %s86 = ssub.s32 %s22, %s29
      %p87 = scmp.eq.s32.totalorder %s86, 0
      %s89 = sadd.s32 %s88, 1
      %s90 = scalar_select %p87, %s88, %s89
      %p93 = pneg %p87
      %p94 = scmp.eq.s32.totalorder %s14, 1
      %p95 = por %p93, %p94
      %p96 = scmp.ne.s32.totalorder %s88, %s91
      %p97 = scmp.eq.s32.totalorder %s14, 0
      %p98 = por %p96, %p97
      %p99 = scmp.ne.s32.totalorder %s88, %s91
      %p100 = scmp.eq.s32.totalorder %s19, 1
      %p101 = por %p99, %p100
      %p102 = scmp.ne.s32.totalorder %s91, %s92
      %p103 = scmp.eq.s32.totalorder %s19, 0
      %p104 = por %p102, %p103
      %p105 = scmp.ne.s32.totalorder %s91, %s92
      %p106 = scmp.eq.s32.totalorder %s20, 1
      %p107 = por %p105, %p106
      %p109 = scmp.ne.s32.totalorder %s92, %s108
      %p110 = scmp.eq.s32.totalorder %s20, 0
      %p111 = por %p109, %p110
      %s112 = ssub.s32 %s22, %s29
      %p113 = scmp.eq.s32.totalorder %s112, 0
      %s115 = sadd.s32 %s114, 1
      %s116 = scalar_select %p113, %s114, %s115
      %p119 = pneg %p113
      %p120 = scmp.eq.s32.totalorder %s14, 1
      %p121 = por %p119, %p120
      %p122 = scmp.ne.s32.totalorder %s114, %s117
      %p123 = scmp.eq.s32.totalorder %s14, 0
      %p124 = por %p122, %p123
      %p125 = scmp.ne.s32.totalorder %s114, %s117
      %p126 = scmp.eq.s32.totalorder %s19, 1
      %p127 = por %p125, %p126
      %p128 = scmp.ne.s32.totalorder %s117, %s118
      %p129 = scmp.eq.s32.totalorder %s19, 0
      %p130 = por %p128, %p129
      %p131 = scmp.ne.s32.totalorder %s117, %s118
      %p132 = scmp.eq.s32.totalorder %s20, 1
      %p133 = por %p131, %p132
      %p135 = scmp.ne.s32.totalorder %s118, %s134
      %p136 = scmp.eq.s32.totalorder %s20, 0
      %p137 = por %p135, %p136
      %s138 = ssub.s32 %s22, %s29
      %p139 = scmp.eq.s32.totalorder %s138, 0
      %s141 = sadd.s32 %s140, 1
      %s142 = scalar_select %p139, %s140, %s141
      %p145 = pneg %p139
      %p146 = scmp.eq.s32.totalorder %s14, 1
      %p147 = por %p145, %p146
      %p148 = scmp.ne.s32.totalorder %s140, %s143
      %p149 = scmp.eq.s32.totalorder %s14, 0
      %p150 = por %p148, %p149
      %p151 = scmp.ne.s32.totalorder %s140, %s143
      %p152 = scmp.eq.s32.totalorder %s19, 1
      %p153 = por %p151, %p152
      %p154 = scmp.ne.s32.totalorder %s143, %s144
      %p155 = scmp.eq.s32.totalorder %s19, 0
      %p156 = por %p154, %p155
      %p157 = scmp.ne.s32.totalorder %s143, %s144
      %p158 = scmp.eq.s32.totalorder %s20, 1
      %p159 = por %p157, %p158
      %p161 = scmp.ne.s32.totalorder %s144, %s160
      %p162 = scmp.eq.s32.totalorder %s20, 0
      %p163 = por %p161, %p162
      %s164 = ssub.s32 %s21, %s33
      %p165 = scmp.eq.s32.totalorder %s164, 0
      %s167 = sadd.s32 %s166, 1
      %s168 = scalar_select %p165, %s166, %s167
      %p171 = pneg %p165
      %p172 = scmp.eq.s32.totalorder %s14, 1
      %p173 = por %p171, %p172
      %p174 = scmp.ne.s32.totalorder %s166, %s169
      %p175 = scmp.eq.s32.totalorder %s14, 0
      %p176 = por %p174, %p175
      %p177 = scmp.ne.s32.totalorder %s166, %s169
      %p178 = scmp.eq.s32.totalorder %s19, 1
      %p179 = por %p177, %p178
      %p180 = scmp.ne.s32.totalorder %s169, %s170
      %p181 = scmp.eq.s32.totalorder %s19, 0
      %p182 = por %p180, %p181
      %p183 = scmp.ne.s32.totalorder %s169, %s170
      %p184 = scmp.eq.s32.totalorder %s20, 1
      %p185 = por %p183, %p184
      %p187 = scmp.ne.s32.totalorder %s170, %s186
      %p188 = scmp.eq.s32.totalorder %s20, 0
      %p189 = por %p187, %p188
      %p190 = scmp.le.s32.totalorder 1, %s14
      %p191 = scmp.lt.s32.totalorder %s14, 3
      %p192 = pnand %p190, %p191
      %p193 = pneg %p192
      // Predicated region
      $region9: #{tpu_custom_call.1} parent=5 // pred_check
        _
      $region10: #{tpu_custom_call.1} parent=5 // pred_check_branch
        %195 = sbr.rel (%p192) target = $region12
      $region11: #{tpu_custom_call.1} parent=5 // pred_region
        %s196 = ssub.s32 %s14, 1
        // Predicated region
        $region13: #{tpu_custom_call.1} parent=11 // pred_check
          %p197 = pneg %p104
        $region14: #{tpu_custom_call.1} parent=11 // pred_check_branch
          %199 = sbr.rel (%p197) target = $region16
        $region15: #{tpu_custom_call.1} parent=11 // pred_region
          %s200 = smul.u32 4, %s24
          %p201 = scmp.lt.s32.totalorder %s200, 3
          %s202 = scalar_select %p201, %s200, 3
          %s203 = smul.addr %s202, 4
          %s204 = scalar_lea.vmem %s2, %s203
          %s205 = smul.u32 4, %s24
        $region16: #{tpu_custom_call.1} parent=11 // pred_fallthru
          _
        // Predicated region
        $region17: #{tpu_custom_call.1} parent=11 // pred_check
          %p206 = pneg %p130
        $region18: #{tpu_custom_call.1} parent=11 // pred_check_branch
          %208 = sbr.rel (%p206) target = $region20
        $region19: #{tpu_custom_call.1} parent=11 // pred_region
          %s209 = smul.u32 4, %s24
          %p210 = scmp.lt.s32.totalorder %s209, 3
          %s211 = scalar_select %p210, %s209, 3
          %s212 = smul.addr %s211, 4
          %s213 = scalar_lea.vmem %s3, %s212
          %s214 = smul.u32 4, %s24
        $region20: #{tpu_custom_call.1} parent=11 // pred_fallthru
          _
        // Predicated region
        $region21: #{tpu_custom_call.1} parent=11 // pred_check
          %p215 = pneg %p156
        $region22: #{tpu_custom_call.1} parent=11 // pred_check_branch
          %217 = sbr.rel (%p215) target = $region24
        $region23: #{tpu_custom_call.1} parent=11 // pred_region
          %s218 = smul.u32 64, %s24
          %p219 = scmp.lt.s32.totalorder %s218, 63
          %s220 = scalar_select %p219, %s218, 63
          %s221 = smul.addr %s220, 8
          %s222 = scalar_lea.vmem %s4, %s221
          %s223 = smul.u32 64, %s24
        $region24: #{tpu_custom_call.1} parent=11 // pred_fallthru
          _
      $region12: #{tpu_custom_call.1} parent=5 // pred_fallthru
        _
      %p224 = scmp.lt.s32.totalorder %s14, 2
      // Predicated region
      $region25: #{tpu_custom_call.1} parent=5 // pred_check
        %p225 = pneg %p224
      $region26: #{tpu_custom_call.1} parent=5 // pred_check_branch
        %227 = sbr.rel (%p225) target = $region28
      $region27: #{tpu_custom_call.1} parent=5 // pred_region
        // Predicated region
        $region29: #{tpu_custom_call.1} parent=27 // pred_check
          %p228 = pneg %p46
        $region30: #{tpu_custom_call.1} parent=27 // pred_check_branch
          %230 = sbr.rel (%p228) target = $region32
        $region31: #{tpu_custom_call.1} parent=27 // pred_region
          %p231 = scmp.lt.s32.totalorder %s21, 1
          %s232 = scalar_select %p231, %s21, 1
          %s233 = smul.addr %s232, 4
          %s234 = scalar_lea.vmem %s0, %s233
        $region32: #{tpu_custom_call.1} parent=27 // pred_fallthru
          _
        // Predicated region
        $region33: #{tpu_custom_call.1} parent=27 // pred_check
          %p235 = pneg %p72
        $region34: #{tpu_custom_call.1} parent=27 // pred_check_branch
          %237 = sbr.rel (%p235) target = $region36
        $region35: #{tpu_custom_call.1} parent=27 // pred_region
          %p238 = scmp.lt.s32.totalorder %s21, 1
          %s239 = scalar_select %p238, %s21, 1
          %s240 = smul.addr %s239, 4
          %s241 = scalar_lea.vmem %s1, %s240
        $region36: #{tpu_custom_call.1} parent=27 // pred_fallthru
          _
      $region28: #{tpu_custom_call.1} parent=5 // pred_fallthru
        _
      %p242 = scmp.le.s32.totalorder 1, %s14
      %p243 = scmp.lt.s32.totalorder %s14, 3
      %p244 = pnand %p242, %p243
      %p245 = pneg %p244
      // Predicated region
      $region37: #{tpu_custom_call.1} parent=5 // pred_check
        _
      $region38: #{tpu_custom_call.1} parent=5 // pred_check_branch
        %247 = sbr.rel (%p244) target = $region40
      $region39: #{tpu_custom_call.1} parent=5 // pred_region
        %s248 = ssub.s32 %s14, 1
        %p249 = scmp.lt.s32.totalorder %s23, 1
        %s250 = scalar_select %p249, %s23, 1
        %s251 = smul.addr %s250, 4
        %s252 = scalar_lea.vmem %s0, %s251
        %p253 = pneg %p52
        %p254 = pneg %p49
        %p255 = scmp.lt.s32.totalorder %s23, 1
        %s256 = scalar_select %p255, %s23, 1
        %s257 = smul.addr %s256, 4
        %s258 = scalar_lea.vmem %s1, %s257
        %p259 = pneg %p78
        %p260 = pneg %p75
        %s261 = smul.u32 4, %s24
        %p262 = scmp.lt.s32.totalorder %s261, 3
        %s263 = scalar_select %p262, %s261, 3
        %s264 = smul.addr %s263, 4
        %s265 = scalar_lea.vmem %s2, %s264
        %p266 = pneg %p104
        %p267 = pneg %p101
        %s268 = smul.u32 4, %s24
        %p269 = scmp.lt.s32.totalorder %s268, 3
        %s270 = scalar_select %p269, %s268, 3
        %s271 = smul.addr %s270, 4
        %s272 = scalar_lea.vmem %s3, %s271
        %p273 = pneg %p130
        %p274 = pneg %p127
        %s275 = smul.u32 64, %s24
        %p276 = scmp.lt.s32.totalorder %s275, 63
        %s277 = scalar_select %p276, %s275, 63
        %s278 = smul.addr %s277, 8
        %s279 = scalar_lea.vmem %s4, %s278
        %p280 = pneg %p156
        %p281 = pneg %p153
        %p282 = pneg %p182
        %p283 = pneg %p179
        %s284 = sand.u32 %s169, 1
        %s285 = scalar_lea.sflag [#allocation3], %s284
        %s286 = sand.u32 %s169, 1
        %s287 = smul.addr %s286, 8
        %s288 = scalar_lea.vmem [#allocation2], %s287
        %p289 = scmp.lt.s32.totalorder %s23, 1
        %s290 = scalar_select %p289, %s23, 1
        %s291 = smul.addr %s290, 4
        %s292 = scalar_lea.vmem %s0, %s291
        %p293 = scmp.lt.s32.totalorder %s23, 1
        %s294 = scalar_select %p293, %s23, 1
        %s295 = smul.addr %s294, 4
        %s296 = scalar_lea.vmem %s1, %s295
        %s297 = smul.u32 4, %s24
        %p298 = scmp.lt.s32.totalorder %s297, 3
        %s299 = scalar_select %p298, %s297, 3
        %s300 = smul.addr %s299, 4
        %s301 = scalar_lea.vmem %s2, %s300
        %s302 = smul.u32 4, %s24
        %s303 = smul.u32 4, %s24
        %p304 = scmp.lt.s32.totalorder %s303, 3
        %s305 = scalar_select %p304, %s303, 3
        %s306 = smul.addr %s305, 4
        %s307 = scalar_lea.vmem %s3, %s306
        %s308 = smul.u32 4, %s24
        %s309 = smul.u32 64, %s24
        %p310 = scmp.lt.s32.totalorder %s309, 63
        %s311 = scalar_select %p310, %s309, 63
        %s312 = smul.addr %s311, 8
        %s313 = scalar_lea.vmem %s4, %s312
        %s314 = smul.u32 64, %s24
        %v316 = vld [vmem:[%s296] sm:$0xf]
        %v317 = vld [vmem:[%s307] sm:$0xff]
        %v318 = vld [vmem:[%s307 + $0x8] sm:$0xff]
        %v319 = vld [vmem:[%s307 + $0x10] sm:$0xff]
        %v320 = vld [vmem:[%s307 + $0x18] sm:$0xff]
        %v321 = vld [vmem:[%s307 + $0x20] sm:$0xff]
        %v322 = vld [vmem:[%s307 + $0x28] sm:$0xff]
        %v323 = vld [vmem:[%s307 + $0x30] sm:$0xff]
        %v324 = vld [vmem:[%s307 + $0x38] sm:$0xff]
        %v333 = vunpack.c.l.b16 %v317
        %v334 = vunpack.c.h.b16 %v317
        %v335 = vunpack.c.l.b16 %v318
        %v336 = vunpack.c.h.b16 %v318
        %v337 = vunpack.c.l.b16 %v319
        %v338 = vunpack.c.h.b16 %v319
        %v339 = vunpack.c.l.b16 %v320
        %v340 = vunpack.c.h.b16 %v320
        %v341 = vunpack.c.l.b16 %v321
        %v342 = vunpack.c.h.b16 %v321
        %v343 = vunpack.c.l.b16 %v322
        %v344 = vunpack.c.h.b16 %v322
        %v345 = vunpack.c.l.b16 %v323
        %v346 = vunpack.c.h.b16 %v323
        %v347 = vunpack.c.l.b16 %v324
        %v348 = vunpack.c.h.b16 %v324
        %v349 = vpack.c.b16 %v337, %v333
        %v350 = vpack.c.b16 %v338, %v334
        %v351 = vpack.c.b16 %v339, %v335
        %v352 = vpack.c.b16 %v340, %v336
        %v353 = vpack.c.b16 %v345, %v341
        %v354 = vpack.c.b16 %v346, %v342
        %v355 = vpack.c.b16 %v347, %v343
        %v356 = vpack.c.b16 %v348, %v344
        %vm365 = vcmask 261120
        %v367 = vsel %vm365, %v316, 0
        %369 = vmatprep.subr.bf16.mxu0 0
        %370 = vmatpush1.bf16.msra.mxu0 0
        %371 = vmatprep.subr.bf16.mxu0 0
        %372 = vmatpush1.bf16.msra.mxu0 0
        %373 = vmatprep.subr.bf16.mxu0 0
        %374 = vmatpush1.bf16.msra.mxu0 0
        %375 = vmatprep.subr.bf16.mxu0 0
        %376 = vmatpush1.bf16.msra.mxu0 0
        %377 = vmatprep.subr.bf16.mxu0 0
        %378 = vmatpush1.bf16.msra.mxu0 0
        %379 = vmatprep.subr.bf16.mxu0 0
        %380 = vmatpush1.bf16.msra.mxu0 0
        %381 = vmatprep.subr.bf16.mxu0 %v354
        %382 = vmatpush1.bf16.msra.mxu0 %v353
        %383 = vmatprep.subr.bf16.mxu0 %v350
        %384 = vmatpush1.bf16.msra.mxu0 %v349
        %385 = vmatprep.subr.bf16.mxu0 0
        %386 = vmatpush2.bf16.msra.mxu0 0
        %387 = vmatprep.subr.bf16.mxu0 0
        %388 = vmatpush2.bf16.msra.mxu0 0
        %389 = vmatprep.subr.bf16.mxu0 0
        %390 = vmatpush2.bf16.msra.mxu0 0
        %391 = vmatprep.subr.bf16.mxu0 0
        %392 = vmatpush2.bf16.msra.mxu0 0
        %393 = vmatprep.subr.bf16.mxu0 0
        %394 = vmatpush2.bf16.msra.mxu0 0
        %395 = vmatprep.subr.bf16.mxu0 0
        %396 = vmatpush2.bf16.msra.mxu0 0
        %397 = vmatprep.subr.bf16.mxu0 0
        %398 = vmatpush2.bf16.msra.mxu0 0
        %399 = vmatprep.subr.bf16.mxu0 0
        %400 = vmatpush2.bf16.msra.mxu0 0
        %401 = vmatprep.mubr.bf16.mxu0 0
        %402 = vmatmul.mubr.bf16.gmra.mxu0 %v367
        %v403 = vpop.f32.mrf.mxu0
        %v404 = vadd.f32 0.0, %v403
        %v405 = vpop.f32.mrf.mxu0
        %v406 = vadd.f32 0.0, %v405
        %v407 = vpop.f32.mrf.mxu0
        %v408 = vpop.f32.mrf.mxu0
        %409 = vdwg.mxu0
        %410 = vmatprep.subr.bf16.mxu0 0
        %411 = vmatpush1.bf16.msra.mxu0 0
        %412 = vmatprep.subr.bf16.mxu0 0
        %413 = vmatpush1.bf16.msra.mxu0 0
        %414 = vmatprep.subr.bf16.mxu0 0
        %415 = vmatpush1.bf16.msra.mxu0 0
        %416 = vmatprep.subr.bf16.mxu0 0
        %417 = vmatpush1.bf16.msra.mxu0 0
        %418 = vmatprep.subr.bf16.mxu0 0
        %419 = vmatpush1.bf16.msra.mxu0 0
        %420 = vmatprep.subr.bf16.mxu0 0
        %421 = vmatpush1.bf16.msra.mxu0 0
        %422 = vmatprep.subr.bf16.mxu0 %v356
        %423 = vmatpush1.bf16.msra.mxu0 %v355
        %424 = vmatprep.subr.bf16.mxu0 %v352
        %425 = vmatpush1.bf16.msra.mxu0 %v351
        %426 = vmatprep.subr.bf16.mxu0 0
        %427 = vmatpush2.bf16.msra.mxu0 0
        %428 = vmatprep.subr.bf16.mxu0 0
        %429 = vmatpush2.bf16.msra.mxu0 0
        %430 = vmatprep.subr.bf16.mxu0 0
        %431 = vmatpush2.bf16.msra.mxu0 0
        %432 = vmatprep.subr.bf16.mxu0 0
        %433 = vmatpush2.bf16.msra.mxu0 0
        %434 = vmatprep.subr.bf16.mxu0 0
        %435 = vmatpush2.bf16.msra.mxu0 0
        %436 = vmatprep.subr.bf16.mxu0 0
        %437 = vmatpush2.bf16.msra.mxu0 0
        %438 = vmatprep.subr.bf16.mxu0 0
        %439 = vmatpush2.bf16.msra.mxu0 0
        %440 = vmatprep.subr.bf16.mxu0 0
        %441 = vmatpush2.bf16.msra.mxu0 0
        %442 = vmatprep.mubr.bf16.mxu0 0
        %443 = vmatmul.mubr.bf16.gmra.mxu0 %v367
        %v444 = vpop.f32.mrf.mxu0
        %v445 = vadd.f32 0.0, %v444
        %v446 = vpop.f32.mrf.mxu0
        %v447 = vadd.f32 0.0, %v446
        %v448 = vpop.f32.mrf.mxu0
        %v449 = vpop.f32.mrf.mxu0
        %450 = vdwg.mxu0
        %p451 = scmp.eq.s32.totalorder %s24, 0
        // Predicated region
        $region41: #{tpu_custom_call.1} parent=39 // pred_check
          %p452 = pneg %p451
        $region42: #{tpu_custom_call.1} parent=39 // pred_check_branch
          %454 = sbr.rel (%p452) target = $region44
        $region43: #{tpu_custom_call.1} parent=39 // pred_region
          %vm455 = vcmask 130048
          %456 = vst.msk [vmem:[%s288] sm:$0xff] %vm455, 0.0
        $region44: #{tpu_custom_call.1} parent=39 // pred_fallthru
          _
        %v457 = vld [vmem:[%s292] sm:$0xf]
        %v458 = vld [vmem:[%s301] sm:$0xff]
        %v459 = vld [vmem:[%s301 + $0x8] sm:$0xff]
        %v460 = vld [vmem:[%s301 + $0x10] sm:$0xff]
        %v461 = vld [vmem:[%s301 + $0x18] sm:$0xff]
        %v462 = vld [vmem:[%s301 + $0x20] sm:$0xff]
        %v463 = vld [vmem:[%s301 + $0x28] sm:$0xff]
        %v464 = vld [vmem:[%s301 + $0x30] sm:$0xff]
        %v465 = vld [vmem:[%s301 + $0x38] sm:$0xff]
        %v474 = vunpack.c.l.b16 %v458
        %v475 = vunpack.c.h.b16 %v458
        %v476 = vunpack.c.l.b16 %v459
        %v477 = vunpack.c.h.b16 %v459
        %v478 = vunpack.c.l.b16 %v460
        %v479 = vunpack.c.h.b16 %v460
        %v480 = vunpack.c.l.b16 %v461
        %v481 = vunpack.c.h.b16 %v461
        %v482 = vunpack.c.l.b16 %v462
        %v483 = vunpack.c.h.b16 %v462
        %v484 = vunpack.c.l.b16 %v463
        %v485 = vunpack.c.h.b16 %v463
        %v486 = vunpack.c.l.b16 %v464
        %v487 = vunpack.c.h.b16 %v464
        %v488 = vunpack.c.l.b16 %v465
        %v489 = vunpack.c.h.b16 %v465
        %v490 = vpack.c.b16 %v478, %v474
        %v491 = vpack.c.b16 %v479, %v475
        %v492 = vpack.c.b16 %v480, %v476
        %v493 = vpack.c.b16 %v481, %v477
        %v494 = vpack.c.b16 %v486, %v482
        %v495 = vpack.c.b16 %v487, %v483
        %v496 = vpack.c.b16 %v488, %v484
        %v497 = vpack.c.b16 %v489, %v485
        %v507 = vsel %vm365, %v457, 0
        %509 = vmatprep.subr.bf16.mxu0 0
        %510 = vmatpush1.bf16.msra.mxu0 0
        %511 = vmatprep.subr.bf16.mxu0 0
        %512 = vmatpush1.bf16.msra.mxu0 0
        %513 = vmatprep.subr.bf16.mxu0 0
        %514 = vmatpush1.bf16.msra.mxu0 0
        %515 = vmatprep.subr.bf16.mxu0 0
        %516 = vmatpush1.bf16.msra.mxu0 0
        %517 = vmatprep.subr.bf16.mxu0 0
        %518 = vmatpush1.bf16.msra.mxu0 0
        %519 = vmatprep.subr.bf16.mxu0 0
        %520 = vmatpush1.bf16.msra.mxu0 0
        %521 = vmatprep.subr.bf16.mxu0 %v495
        %522 = vmatpush1.bf16.msra.mxu0 %v494
        %523 = vmatprep.subr.bf16.mxu0 %v491
        %524 = vmatpush1.bf16.msra.mxu0 %v490
        %525 = vmatprep.subr.bf16.mxu0 0
        %526 = vmatpush2.bf16.msra.mxu0 0
        %527 = vmatprep.subr.bf16.mxu0 0
        %528 = vmatpush2.bf16.msra.mxu0 0
        %529 = vmatprep.subr.bf16.mxu0 0
        %530 = vmatpush2.bf16.msra.mxu0 0
        %531 = vmatprep.subr.bf16.mxu0 0
        %532 = vmatpush2.bf16.msra.mxu0 0
        %533 = vmatprep.subr.bf16.mxu0 0
        %534 = vmatpush2.bf16.msra.mxu0 0
        %535 = vmatprep.subr.bf16.mxu0 0
        %536 = vmatpush2.bf16.msra.mxu0 0
        %537 = vmatprep.subr.bf16.mxu0 0
        %538 = vmatpush2.bf16.msra.mxu0 0
        %539 = vmatprep.subr.bf16.mxu0 0
        %540 = vmatpush2.bf16.msra.mxu0 0
        %541 = vmatprep.mubr.bf16.mxu0 0
        %542 = vmatmul.mubr.bf16.gmra.mxu0 %v507
        %v543 = vpop.f32.mrf.mxu0
        %v544 = vadd.f32 0.0, %v543
        %v545 = vpop.f32.mrf.mxu0
        %v546 = vadd.f32 0.0, %v545
        %v547 = vpop.f32.mrf.mxu0
        %v548 = vpop.f32.mrf.mxu0
        %549 = vdwg.mxu0
        %550 = vmatprep.subr.bf16.mxu0 0
        %551 = vmatpush1.bf16.msra.mxu0 0
        %552 = vmatprep.subr.bf16.mxu0 0
        %553 = vmatpush1.bf16.msra.mxu0 0
        %554 = vmatprep.subr.bf16.mxu0 0
        %555 = vmatpush1.bf16.msra.mxu0 0
        %556 = vmatprep.subr.bf16.mxu0 0
        %557 = vmatpush1.bf16.msra.mxu0 0
        %558 = vmatprep.subr.bf16.mxu0 0
        %559 = vmatpush1.bf16.msra.mxu0 0
        %560 = vmatprep.subr.bf16.mxu0 0
        %561 = vmatpush1.bf16.msra.mxu0 0
        %562 = vmatprep.subr.bf16.mxu0 %v497
        %563 = vmatpush1.bf16.msra.mxu0 %v496
        %564 = vmatprep.subr.bf16.mxu0 %v493
        %565 = vmatpush1.bf16.msra.mxu0 %v492
        %566 = vmatprep.subr.bf16.mxu0 0
        %567 = vmatpush2.bf16.msra.mxu0 0
        %568 = vmatprep.subr.bf16.mxu0 0
        %569 = vmatpush2.bf16.msra.mxu0 0
        %570 = vmatprep.subr.bf16.mxu0 0
        %571 = vmatpush2.bf16.msra.mxu0 0
        %572 = vmatprep.subr.bf16.mxu0 0
        %573 = vmatpush2.bf16.msra.mxu0 0
        %574 = vmatprep.subr.bf16.mxu0 0
        %575 = vmatpush2.bf16.msra.mxu0 0
        %576 = vmatprep.subr.bf16.mxu0 0
        %577 = vmatpush2.bf16.msra.mxu0 0
        %578 = vmatprep.subr.bf16.mxu0 0
        %579 = vmatpush2.bf16.msra.mxu0 0
        %580 = vmatprep.subr.bf16.mxu0 0
        %581 = vmatpush2.bf16.msra.mxu0 0
        %582 = vmatprep.mubr.bf16.mxu0 0
        %583 = vmatmul.mubr.bf16.gmra.mxu0 %v507
        %v584 = vpop.f32.mrf.mxu0
        %v585 = vadd.f32 0.0, %v584
        %v586 = vpop.f32.mrf.mxu0
        %v587 = vadd.f32 0.0, %v586
        %v588 = vpop.f32.mrf.mxu0
        %v589 = vpop.f32.mrf.mxu0
        %590 = vdwg.mxu0
        %v591 = vld [vmem:[%s288] sm:$0xff]
        %v592 = vmul.f32 %v544, %v404
        %v593 = vmul.f32 %v546, %v406
        %v594 = vmul.f32 %v585, %v445
        %v595 = vmul.f32 %v587, %v447
        %v596 = vld [vmem:[%s313] sm:$0xff]
        %v597 = vld [vmem:[%s313 + $0x8] sm:$0xff]
        %v598 = vld [vmem:[%s313 + $0x10] sm:$0xff]
        %v599 = vld [vmem:[%s313 + $0x18] sm:$0xff]
        %v600 = vld [vmem:[%s313 + $0x20] sm:$0xff]
        %v601 = vld [vmem:[%s313 + $0x28] sm:$0xff]
        %v602 = vld [vmem:[%s313 + $0x30] sm:$0xff]
        %v603 = vld [vmem:[%s313 + $0x38] sm:$0xff]
        %v604 = vld [vmem:[%s313 + $0x40] sm:$0xff]
        %v605 = vld [vmem:[%s313 + $0x48] sm:$0xff]
        %v606 = vld [vmem:[%s313 + $0x50] sm:$0xff]
        %v607 = vld [vmem:[%s313 + $0x58] sm:$0xff]
        %v608 = vld [vmem:[%s313 + $0x60] sm:$0xff]
        %v609 = vld [vmem:[%s313 + $0x68] sm:$0xff]
        %v610 = vld [vmem:[%s313 + $0x70] sm:$0xff]
        %v611 = vld [vmem:[%s313 + $0x78] sm:$0xff]
        %v612 = vld [vmem:[%s313 + $0x80] sm:$0xff]
        %v613 = vld [vmem:[%s313 + $0x88] sm:$0xff]
        %v614 = vld [vmem:[%s313 + $0x90] sm:$0xff]
        %v615 = vld [vmem:[%s313 + $0x98] sm:$0xff]
        %v616 = vld [vmem:[%s313 + $0xa0] sm:$0xff]
        %v617 = vld [vmem:[%s313 + $0xa8] sm:$0xff]
        %v618 = vld [vmem:[%s313 + $0xb0] sm:$0xff]
        %v619 = vld [vmem:[%s313 + $0xb8] sm:$0xff]
        %v620 = vld [vmem:[%s313 + $0xc0] sm:$0xff]
        %v621 = vld [vmem:[%s313 + $0xc8] sm:$0xff]
        %v622 = vld [vmem:[%s313 + $0xd0] sm:$0xff]
        %v623 = vld [vmem:[%s313 + $0xd8] sm:$0xff]
        %v624 = vld [vmem:[%s313 + $0xe0] sm:$0xff]
        %v625 = vld [vmem:[%s313 + $0xe8] sm:$0xff]
        %v626 = vld [vmem:[%s313 + $0xf0] sm:$0xff]
        %v627 = vld [vmem:[%s313 + $0xf8] sm:$0xff]
        %v628 = vld [vmem:[%s313 + $0x100] sm:$0xff]
        %v629 = vld [vmem:[%s313 + $0x108] sm:$0xff]
        %v630 = vld [vmem:[%s313 + $0x110] sm:$0xff]
        %v631 = vld [vmem:[%s313 + $0x118] sm:$0xff]
        %v632 = vld [vmem:[%s313 + $0x120] sm:$0xff]
        %v633 = vld [vmem:[%s313 + $0x128] sm:$0xff]
        %v634 = vld [vmem:[%s313 + $0x130] sm:$0xff]
        %v635 = vld [vmem:[%s313 + $0x138] sm:$0xff]
        %v636 = vld [vmem:[%s313 + $0x140] sm:$0xff]
        %v637 = vld [vmem:[%s313 + $0x148] sm:$0xff]
        %v638 = vld [vmem:[%s313 + $0x150] sm:$0xff]
        %v639 = vld [vmem:[%s313 + $0x158] sm:$0xff]
        %v640 = vld [vmem:[%s313 + $0x160] sm:$0xff]
        %v641 = vld [vmem:[%s313 + $0x168] sm:$0xff]
        %v642 = vld [vmem:[%s313 + $0x170] sm:$0xff]
        %v643 = vld [vmem:[%s313 + $0x178] sm:$0xff]
        %v644 = vld [vmem:[%s313 + $0x180] sm:$0xff]
        %v645 = vld [vmem:[%s313 + $0x188] sm:$0xff]
        %v646 = vld [vmem:[%s313 + $0x190] sm:$0xff]
        %v647 = vld [vmem:[%s313 + $0x198] sm:$0xff]
        %v648 = vld [vmem:[%s313 + $0x1a0] sm:$0xff]
        %v649 = vld [vmem:[%s313 + $0x1a8] sm:$0xff]
        %v650 = vld [vmem:[%s313 + $0x1b0] sm:$0xff]
        %v651 = vld [vmem:[%s313 + $0x1b8] sm:$0xff]
        %v652 = vld [vmem:[%s313 + $0x1c0] sm:$0xff]
        %v653 = vld [vmem:[%s313 + $0x1c8] sm:$0xff]
        %v654 = vld [vmem:[%s313 + $0x1d0] sm:$0xff]
        %v655 = vld [vmem:[%s313 + $0x1d8] sm:$0xff]
        %v656 = vld [vmem:[%s313 + $0x1e0] sm:$0xff]
        %v657 = vld [vmem:[%s313 + $0x1e8] sm:$0xff]
        %v658 = vld [vmem:[%s313 + $0x1f0] sm:$0xff]
        %v659 = vld [vmem:[%s313 + $0x1f8] sm:$0xff]
        %660 = vmatprep.subr.mxu0 0.0
        %661 = vmatpush1.msra.mxu0 %v611
        %662 = vmatprep.subr.mxu0 0.0
        %663 = vmatpush1.msra.mxu0 %v610
        %664 = vmatprep.subr.mxu0 0.0
        %665 = vmatpush1.msra.mxu0 %v609
        %666 = vmatprep.subr.mxu0 0.0
        %667 = vmatpush1.msra.mxu0 %v608
        %668 = vmatprep.subr.mxu0 0.0
        %669 = vmatpush1.msra.mxu0 %v607
        %670 = vmatprep.subr.mxu0 0.0
        %671 = vmatpush1.msra.mxu0 %v606
        %672 = vmatprep.subr.mxu0 0.0
        %673 = vmatpush1.msra.mxu0 %v605
        %674 = vmatprep.subr.mxu0 0.0
        %675 = vmatpush1.msra.mxu0 %v604
        %676 = vmatprep.subr.mxu0 0.0
        %677 = vmatpush1.msra.mxu0 %v603
        %678 = vmatprep.subr.mxu0 0.0
        %679 = vmatpush1.msra.mxu0 %v602
        %680 = vmatprep.subr.mxu0 0.0
        %681 = vmatpush1.msra.mxu0 %v601
        %682 = vmatprep.subr.mxu0 0.0
        %683 = vmatpush1.msra.mxu0 %v600
        %684 = vmatprep.subr.mxu0 0.0
        %685 = vmatpush1.msra.mxu0 %v599
        %686 = vmatprep.subr.mxu0 0.0
        %687 = vmatpush1.msra.mxu0 %v598
        %688 = vmatprep.subr.mxu0 0.0
        %689 = vmatpush1.msra.mxu0 %v597
        %690 = vmatprep.subr.mxu0 0.0
        %691 = vmatpush1.msra.mxu0 %v596
        %692 = vmatprep.subr.mxu0 0.0
        %693 = vmatpush2.msra.mxu0 %v627
        %694 = vmatprep.subr.mxu0 0.0
        %695 = vmatpush2.msra.mxu0 %v626
        %696 = vmatprep.subr.mxu0 0.0
        %697 = vmatpush2.msra.mxu0 %v625
        %698 = vmatprep.subr.mxu0 0.0
        %699 = vmatpush2.msra.mxu0 %v624
        %700 = vmatprep.subr.mxu0 0.0
        %701 = vmatpush2.msra.mxu0 %v623
        %702 = vmatprep.subr.mxu0 0.0
        %703 = vmatpush2.msra.mxu0 %v622
        %704 = vmatprep.subr.mxu0 0.0
        %705 = vmatpush2.msra.mxu0 %v621
        %706 = vmatprep.subr.mxu0 0.0
        %707 = vmatpush2.msra.mxu0 %v620
        %708 = vmatprep.subr.mxu0 0.0
        %709 = vmatpush2.msra.mxu0 %v619
        %710 = vmatprep.subr.mxu0 0.0
        %711 = vmatpush2.msra.mxu0 %v618
        %712 = vmatprep.subr.mxu0 0.0
        %713 = vmatpush2.msra.mxu0 %v617
        %714 = vmatprep.subr.mxu0 0.0
        %715 = vmatpush2.msra.mxu0 %v616
        %716 = vmatprep.subr.mxu0 0.0
        %717 = vmatpush2.msra.mxu0 %v615
        %718 = vmatprep.subr.mxu0 0.0
        %719 = vmatpush2.msra.mxu0 %v614
        %720 = vmatprep.subr.mxu0 0.0
        %721 = vmatpush2.msra.mxu0 %v613
        %722 = vmatprep.subr.mxu0 0.0
        %723 = vmatpush2.msra.mxu0 %v612
        %724 = vmatprep.mubr.f32.mxu0 %v593
        %725 = vmatmul.mubr.f32.gmra.mxu0 %v592
        %v726 = vpop.f32.mrf.mxu0
        %v727 = vadd.f32 0.0, %v726
        %v728 = vpop.f32.mrf.mxu0
        %729 = vdwg.mxu0
        %730 = vmatprep.subr.mxu0 0.0
        %731 = vmatpush1.msra.mxu0 %v643
        %732 = vmatprep.subr.mxu0 0.0
        %733 = vmatpush1.msra.mxu0 %v642
        %734 = vmatprep.subr.mxu0 0.0
        %735 = vmatpush1.msra.mxu0 %v641
        %736 = vmatprep.subr.mxu0 0.0
        %737 = vmatpush1.msra.mxu0 %v640
        %738 = vmatprep.subr.mxu0 0.0
        %739 = vmatpush1.msra.mxu0 %v639
        %740 = vmatprep.subr.mxu0 0.0
        %741 = vmatpush1.msra.mxu0 %v638
        %742 = vmatprep.subr.mxu0 0.0
        %743 = vmatpush1.msra.mxu0 %v637
        %744 = vmatprep.subr.mxu0 0.0
        %745 = vmatpush1.msra.mxu0 %v636
        %746 = vmatprep.subr.mxu0 0.0
        %747 = vmatpush1.msra.mxu0 %v635
        %748 = vmatprep.subr.mxu0 0.0
        %749 = vmatpush1.msra.mxu0 %v634
        %750 = vmatprep.subr.mxu0 0.0
        %751 = vmatpush1.msra.mxu0 %v633
        %752 = vmatprep.subr.mxu0 0.0
        %753 = vmatpush1.msra.mxu0 %v632
        %754 = vmatprep.subr.mxu0 0.0
        %755 = vmatpush1.msra.mxu0 %v631
        %756 = vmatprep.subr.mxu0 0.0
        %757 = vmatpush1.msra.mxu0 %v630
        %758 = vmatprep.subr.mxu0 0.0
        %759 = vmatpush1.msra.mxu0 %v629
        %760 = vmatprep.subr.mxu0 0.0
        %761 = vmatpush1.msra.mxu0 %v628
        %762 = vmatprep.subr.mxu0 0.0
        %763 = vmatpush2.msra.mxu0 %v659
        %764 = vmatprep.subr.mxu0 0.0
        %765 = vmatpush2.msra.mxu0 %v658
        %766 = vmatprep.subr.mxu0 0.0
        %767 = vmatpush2.msra.mxu0 %v657
        %768 = vmatprep.subr.mxu0 0.0
        %769 = vmatpush2.msra.mxu0 %v656
        %770 = vmatprep.subr.mxu0 0.0
        %771 = vmatpush2.msra.mxu0 %v655
        %772 = vmatprep.subr.mxu0 0.0
        %773 = vmatpush2.msra.mxu0 %v654
        %774 = vmatprep.subr.mxu0 0.0
        %775 = vmatpush2.msra.mxu0 %v653
        %776 = vmatprep.subr.mxu0 0.0
        %777 = vmatpush2.msra.mxu0 %v652
        %778 = vmatprep.subr.mxu0 0.0
        %779 = vmatpush2.msra.mxu0 %v651
        %780 = vmatprep.subr.mxu0 0.0
        %781 = vmatpush2.msra.mxu0 %v650
        %782 = vmatprep.subr.mxu0 0.0
        %783 = vmatpush2.msra.mxu0 %v649
        %784 = vmatprep.subr.mxu0 0.0
        %785 = vmatpush2.msra.mxu0 %v648
        %786 = vmatprep.subr.mxu0 0.0
        %787 = vmatpush2.msra.mxu0 %v647
        %788 = vmatprep.subr.mxu0 0.0
        %789 = vmatpush2.msra.mxu0 %v646
        %790 = vmatprep.subr.mxu0 0.0
        %791 = vmatpush2.msra.mxu0 %v645
        %792 = vmatprep.subr.mxu0 0.0
        %793 = vmatpush2.msra.mxu0 %v644
        %794 = vmatprep.mubr.f32.mxu0 %v595
        %795 = vmatmul.mubr.f32.gmra.mxu0 %v594
        %v796 = vpop.f32.mrf.mxu0
        %v797 = vadd.f32 %v727, %v796
        %v798 = vpop.f32.mrf.mxu0
        %799 = vdwg.mxu0
        %v800 = vadd.f32 %v591, %v797
        %vm801 = vcmask 130048
        %802 = vst.msk [vmem:[%s288] sm:$0xff] %vm801, %v800
        %s803 = sand.u32 %s169, 1
        %s804 = scalar_lea.sflag [#allocation3], %s803
        %s805 = sand.u32 %s169, 1
        %s806 = smul.addr %s805, 8
        %s807 = scalar_lea.vmem [#allocation2], %s806
        // Predicated region
        $region45: #{tpu_custom_call.1} parent=39 // pred_check
          %p808 = pneg %p179
        $region46: #{tpu_custom_call.1} parent=39 // pred_check_branch
          %810 = sbr.rel (%p808) target = $region48
        $region47: #{tpu_custom_call.1} parent=39 // pred_region
          %s812 = ssub.s32 128, 128
          %813 = vsyncadd %s804, %s812
          %s814 = smul.addr %s23, 128
          %s815 = scalar_lea.hbm %s5, %s814
          %s817 = sshll.u32 %s807, 4
          %s818 = int_to_ptr.vmem [resolvable:$true] %s817
          %820 = dma.vmem_to_hbm [thread:$0]  %s818, 128, %s815, %s804
        $region48: #{tpu_custom_call.1} parent=39 // pred_fallthru
          _
      $region40: #{tpu_custom_call.1} parent=5 // pred_fallthru
        _
      %p821 = scmp.le.s32.totalorder 2, %s14
      // Predicated region
      $region49: #{tpu_custom_call.1} parent=5 // pred_check
        %p822 = pneg %p821
      $region50: #{tpu_custom_call.1} parent=5 // pred_check_branch
        %824 = sbr.rel (%p822) target = $region52
      $region51: #{tpu_custom_call.1} parent=5 // pred_region
        %s825 = ssub.s32 %s14, 2
        // Predicated region
        $region53: #{tpu_custom_call.1} parent=51 // pred_check
          %p826 = pneg %p185
        $region54: #{tpu_custom_call.1} parent=51 // pred_check_branch
          %828 = sbr.rel (%p826) target = $region56
        $region55: #{tpu_custom_call.1} parent=51 // pred_region
          %s829 = sand.u32 %s170, 1
          %s830 = scalar_lea.sflag [#allocation3], %s829
          %s831 = sand.u32 %s170, 1
          %s832 = smul.addr %s831, 8
          %s833 = scalar_lea.vmem [#allocation2], %s832
          %834 = dma.done %s830, 128
        $region56: #{tpu_custom_call.1} parent=51 // pred_fallthru
          _
      $region52: #{tpu_custom_call.1} parent=5 // pred_fallthru
        _
    $region6: #{tpu_custom_call.1} parent=1 // loop_footer
      %s18 = sadd.s32 1, %s14
    $region7: #{tpu_custom_call.1} parent=1 // loop_footer_branch
      %13 = sbr.rel target = $region3
    $region8: #{tpu_custom_call.1} parent=1 // loop_exit
      _
    %835 = vsyncpa [#allocation3], 1
    %s836 = scalar_lea.sflag [#allocation3], 1
    %837 = vsyncpa %s836, 1

</llo_original>
